<compile_context>
chip_gen: v7x
topology: tpu7x:2x2x1
jax: 0.10.0
libtpu: 0.0.40
codegen_flags: <defaults>
</compile_context>

<pallas_src>
import functools

import jax
import jax.numpy as jnp
from jax import lax
from jax.experimental import pallas as pl
from jax.experimental.pallas import tpu as pltpu

_EPS = 1e-8  # matches F.cosine_similarity eps clamp


def _interclass_kernel(f_ref, lab_ref, c_ref, inv_cn_ref, c_sq_ref,
                       inter_ref, sq_ref, *, seq_len, tile_t, num_classes):
    """One (batch, seq-tile) block of the loss, computed in the native (D, T) layout.

    f_ref      : (1, D, TT) f32   feature tile (channels x seq columns)
    lab_ref    : (1, 1, TT) i32   label tile
    c_ref      : (C, D)  f32      class centers (grid-resident)
    inv_cn_ref : (C, 1)  f32      1 / max(||center||, eps)
    c_sq_ref   : (C, 1)  f32      ||center||^2
    inter_ref  : (1, 1, 8, 128) f32  partial sum of inter_dis over valid columns (out)
    sq_ref     : (1, 1, 8, 128) f32  partial sum of ||f - center[label]||^2 (out)
    """
    f = f_ref[0]                                                  # (D, TT)
    lab = lab_ref[0]                                              # (1, TT)

    # Single MXU matmul on the native layout: raw feature . center dot products.
    raw = lax.dot_general(c_ref[...], f, (((1,), (0,)), ((), ())),
                          preferred_element_type=jnp.float32)     # (C, TT)

    f_sq = jnp.sum(f * f, axis=0, keepdims=True)                  # (1, TT)
    inv_f = pl.reciprocal(jnp.maximum(jnp.sqrt(f_sq), _EPS), approx=True)

    # pairwise cosine distance: 1 - <f,c> / (max(||f||,eps) * max(||c||,eps))
    dist = 1.0 - raw * inv_f * inv_cn_ref[...]                    # (C, TT)

    # one-hot(labels) built in-kernel (no (N, C) mask streamed from HBM)
    class_ids = lax.broadcasted_iota(jnp.int32, (num_classes, tile_t), 0)
    onehot = (class_ids == lab).astype(jnp.float32)               # (C, TT)

    correct = jnp.sum(onehot * dist, axis=0, keepdims=True)       # (1, TT)
    total = jnp.sum(dist, axis=0, keepdims=True)                  # (1, TT)
    denom = jnp.maximum(total - correct, _EPS)                    # guard d / 0
    inter = correct * pl.reciprocal(denom, approx=True)           # (1, TT)

    # ||f - centers[label]||^2 via the dot identity (no second matmul / gather)
    dot_lab = jnp.sum(onehot * raw, axis=0, keepdims=True)        # (1, TT)
    csq_lab = jnp.sum(onehot * c_sq_ref[...], axis=0, keepdims=True)
    sq = jnp.maximum(f_sq - 2.0 * dot_lab + csq_lab, 0.0)         # (1, TT)

    # mask padded columns in a partial last tile
    col0 = pl.program_id(1) * tile_t
    cols = lax.broadcasted_iota(jnp.int32, (1, tile_t), 1) + col0
    valid = (cols < seq_len).astype(jnp.float32)                  # (1, TT)

    inter_part = jnp.sum(inter * valid, keepdims=True)            # (1, 1)
    sq_part = jnp.sum(sq * valid, keepdims=True)                  # (1, 1)

    # lane-dense, (8,128)-aligned partial-sum tiles -> unmasked vector stores
    inter_ref[...] = jnp.broadcast_to(inter_part.reshape(1, 1, 1, 1), (1, 1, 8, 128))
    sq_ref[...] = jnp.broadcast_to(sq_part.reshape(1, 1, 1, 1), (1, 1, 8, 128))


def inter_class_loss(features, labels, centers, lambda_intra=1.0, max_tile_t=512):
    """features: (B, D, T) float32; labels: (B*T,) int; centers: (C, D) float32."""
    B, D, T = features.shape
    C = centers.shape[0]
    N = B * T

    features = features.astype(jnp.float32)
    # labels are ordered to match features.transpose(1,2).reshape(-1, D): n = b*T + t
    labels3d = labels.astype(jnp.int32).reshape(B, 1, T)          # metadata-only reshape

    # Tiny per-class precomputes, done once in the wrapper (C x D is small).
    centers = centers.astype(jnp.float32)
    c_sq = jnp.sum(centers * centers, axis=-1, keepdims=True)     # (C, 1)
    inv_cn = 1.0 / jnp.maximum(jnp.sqrt(c_sq), _EPS)              # (C, 1)

    # Seq tile: full T if small (block == full dim is always legal), else a multiple of 128.
    tt = T if T <= max_tile_t else (max_tile_t // 128) * 128
    nt = (T + tt - 1) // tt

    kernel = functools.partial(_interclass_kernel, seq_len=T, tile_t=tt, num_classes=C)

    inter_p, sq_p = pl.pallas_call(
        kernel,
        out_shape=(jax.ShapeDtypeStruct((B, nt, 8, 128), jnp.float32),
                   jax.ShapeDtypeStruct((B, nt, 8, 128), jnp.float32)),
        grid_spec=pltpu.PrefetchScalarGridSpec(
            num_scalar_prefetch=0,
            grid=(B, nt),
            in_specs=[
                pl.BlockSpec((1, D, tt), lambda b, t: (b, 0, t)),   # features (native NCT)
                pl.BlockSpec((1, 1, tt), lambda b, t: (b, 0, t)),   # labels tile
                pl.BlockSpec((C, D), lambda b, t: (0, 0)),          # centers (resident)
                pl.BlockSpec((C, 1), lambda b, t: (0, 0)),          # 1/||c|| (resident)
                pl.BlockSpec((C, 1), lambda b, t: (0, 0)),          # ||c||^2 (resident)
            ],
            out_specs=(
                pl.BlockSpec((1, 1, 8, 128), lambda b, t: (b, t, 0, 0)),
                pl.BlockSpec((1, 1, 8, 128), lambda b, t: (b, t, 0, 0)),
            ),
        ),
        compiler_params=pltpu.CompilerParams(
            dimension_semantics=("parallel", "parallel"),
            vmem_limit_bytes=64 * 1024 * 1024,
        ),
    )(features, labels3d, centers, inv_cn, c_sq)

    loss_ratio = jnp.sum(inter_p[:, :, 0, 0]) / N                 # inter_dis.mean()
    center_loss = jnp.sum(sq_p[:, :, 0, 0]) / (N * D)             # nn.MSELoss() (mean)
    intra_class_loss = 0.0                                        # reference sets it to 0
    total_loss = loss_ratio + lambda_intra * intra_class_loss + center_loss
    return total_loss


if __name__ == "__main__":
    key = jax.random.PRNGKey(0)
    k_feat, k_lab, k_cent = jax.random.split(key, 3)

    B, D, T = 2, 32, 16          # batch, feature_dim, seq
    C = 8                        # num_classes
    features = jax.random.normal(k_feat, (B, D, T), dtype=jnp.float32)
    labels = jax.random.randint(k_lab, (B * T,), 0, C, dtype=jnp.int32)
    # deterministic "parameter": nn.Parameter(torch.randn(num_classes, feature_dim))
    centers = jax.random.normal(k_cent, (C, D), dtype=jnp.float32)

    loss = inter_class_loss(features, labels, centers, lambda_intra=1.0)
    jax.block_until_ready(loss)
    assert loss.shape == () and bool(jnp.isfinite(loss))
    print("KERNEL_OK")
</pallas_src>

<mosaic_0001>
module attributes {stable_mosaic.version = 11 : i64} {
  func.func @_interclass_kernel(%arg0: i32, %arg1: i32, %arg2: memref<1x32x16xf32, #tpu.memory_space<vmem>>, %arg3: memref<1x1x16xi32, #tpu.memory_space<vmem>>, %arg4: memref<8x32xf32, #tpu.memory_space<vmem>>, %arg5: memref<8x1xf32, #tpu.memory_space<vmem>>, %arg6: memref<8x1xf32, #tpu.memory_space<vmem>>, %arg7: memref<1x1x8x128xf32, #tpu.memory_space<vmem>>, %arg8: memref<1x1x8x128xf32, #tpu.memory_space<vmem>>) attributes {dimension_semantics = [#tpu.dimension_semantics<parallel>, #tpu.dimension_semantics<parallel>], iteration_bounds = array<i64: 2, 1>, scalar_prefetch = 0 : i64, scratch_operands = 0 : i64, tpu.core_type = #tpu.core_type<tc>, window_params = [{transform_indices = @transform_0, window_bounds = array<i64: 1, 32, 16>}, {transform_indices = @transform_1, window_bounds = array<i64: 1, 1, 16>}, {pipeline_mode = #tpu.pipeline_mode<synchronous>, transform_indices = @transform_2, window_bounds = array<i64: 8, 32>}, {pipeline_mode = #tpu.pipeline_mode<synchronous>, transform_indices = @transform_3, window_bounds = array<i64: 8, 1>}, {pipeline_mode = #tpu.pipeline_mode<synchronous>, transform_indices = @transform_4, window_bounds = array<i64: 8, 1>}, {transform_indices = @transform_5, window_bounds = array<i64: 1, 1, 8, 128>}, {transform_indices = @transform_6, window_bounds = array<i64: 1, 1, 8, 128>}]} {
    %c0 = arith.constant 0 : index
    %c0_0 = arith.constant 0 : index
    %c0_1 = arith.constant 0 : index
    %0 = vector.load %arg2[%c0, %c0_0, %c0_1] : memref<1x32x16xf32, #tpu.memory_space<vmem>>, vector<1x32x16xf32>
    %1 = vector.shape_cast %0 : vector<1x32x16xf32> to vector<32x16xf32>
    %c0_2 = arith.constant 0 : index
    %c0_3 = arith.constant 0 : index
    %c0_4 = arith.constant 0 : index
    %2 = vector.load %arg3[%c0_2, %c0_3, %c0_4] : memref<1x1x16xi32, #tpu.memory_space<vmem>>, vector<1x1x16xi32>
    %3 = vector.shape_cast %2 : vector<1x1x16xi32> to vector<1x16xi32>
    %c0_5 = arith.constant 0 : index
    %c0_6 = arith.constant 0 : index
    %4 = vector.load %arg4[%c0_5, %c0_6] : memref<8x32xf32, #tpu.memory_space<vmem>>, vector<8x32xf32>
    %cst = arith.constant dense<0.000000e+00> : vector<8x16xf32>
    %5 = tpu.matmul %4, %1, %cst {dimension_numbers = #tpu.dot_dimension_numbers<[1], [0], [0], [1], [0, 0, 1, 1], [], []>} : vector<8x32xf32>, vector<32x16xf32>, vector<8x16xf32> -> vector<8x16xf32>
    %6 = arith.mulf %1, %1 : vector<32x16xf32>
    %cst_7 = arith.constant dense<0.000000e+00> : vector<16xf32>
    %7 = vector.multi_reduction <add>, %6, %cst_7 [0] : vector<32x16xf32> to vector<16xf32>
    %8 = vector.shape_cast %7 : vector<16xf32> to vector<1x16xf32>
    %9 = math.sqrt %8 : vector<1x16xf32>
    %cst_8 = arith.constant 9.99999993E-9 : f32
    %10 = vector.broadcast %cst_8 : f32 to vector<1x16xf32>
    %11 = arith.maximumf %9, %10 : vector<1x16xf32>
    %12 = tpu.reciprocal %11 {approx = true} : vector<1x16xf32> -> vector<1x16xf32>
    %13 = vector.broadcast %12 : vector<1x16xf32> to vector<8x16xf32>
    %14 = arith.mulf %5, %13 : vector<8x16xf32>
    %c0_9 = arith.constant 0 : index
    %c0_10 = arith.constant 0 : index
    %15 = vector.load %arg5[%c0_9, %c0_10] : memref<8x1xf32, #tpu.memory_space<vmem>>, vector<8x1xf32>
    %16 = vector.broadcast %15 : vector<8x1xf32> to vector<8x16xf32>
    %17 = arith.mulf %14, %16 : vector<8x16xf32>
    %cst_11 = arith.constant 1.000000e+00 : f32
    %18 = vector.broadcast %cst_11 : f32 to vector<8x16xf32>
    %19 = arith.subf %18, %17 : vector<8x16xf32>
    %20 = tpu.iota {dimensions = array<i32: 0>} : vector<8x16xi32>
    %21 = vector.broadcast %3 : vector<1x16xi32> to vector<8x16xi32>
    %22 = arith.cmpi eq, %20, %21 : vector<8x16xi32>
    %23 = arith.extui %22 : vector<8x16xi1> to vector<8x16xi32>
    %24 = arith.sitofp %23 : vector<8x16xi32> to vector<8x16xf32>
    %25 = arith.mulf %24, %19 : vector<8x16xf32>
    %cst_12 = arith.constant dense<0.000000e+00> : vector<16xf32>
    %26 = vector.multi_reduction <add>, %25, %cst_12 [0] : vector<8x16xf32> to vector<16xf32>
    %27 = vector.shape_cast %26 : vector<16xf32> to vector<1x16xf32>
    %cst_13 = arith.constant dense<0.000000e+00> : vector<16xf32>
    %28 = vector.multi_reduction <add>, %19, %cst_13 [0] : vector<8x16xf32> to vector<16xf32>
    %29 = vector.shape_cast %28 : vector<16xf32> to vector<1x16xf32>
    %30 = arith.subf %29, %27 : vector<1x16xf32>
    %cst_14 = arith.constant 9.99999993E-9 : f32
    %31 = vector.broadcast %cst_14 : f32 to vector<1x16xf32>
    %32 = arith.maximumf %30, %31 : vector<1x16xf32>
    %33 = tpu.reciprocal %32 {approx = true} : vector<1x16xf32> -> vector<1x16xf32>
    %34 = arith.mulf %27, %33 : vector<1x16xf32>
    %35 = arith.mulf %24, %5 : vector<8x16xf32>
    %cst_15 = arith.constant dense<0.000000e+00> : vector<16xf32>
    %36 = vector.multi_reduction <add>, %35, %cst_15 [0] : vector<8x16xf32> to vector<16xf32>
    %37 = vector.shape_cast %36 : vector<16xf32> to vector<1x16xf32>
    %c0_16 = arith.constant 0 : index
    %c0_17 = arith.constant 0 : index
    %38 = vector.load %arg6[%c0_16, %c0_17] : memref<8x1xf32, #tpu.memory_space<vmem>>, vector<8x1xf32>
    %39 = vector.broadcast %38 : vector<8x1xf32> to vector<8x16xf32>
    %40 = arith.mulf %24, %39 : vector<8x16xf32>
    %cst_18 = arith.constant dense<0.000000e+00> : vector<16xf32>
    %41 = vector.multi_reduction <add>, %40, %cst_18 [0] : vector<8x16xf32> to vector<16xf32>
    %42 = vector.shape_cast %41 : vector<16xf32> to vector<1x16xf32>
    %cst_19 = arith.constant 2.000000e+00 : f32
    %43 = vector.broadcast %cst_19 : f32 to vector<1x16xf32>
    %44 = arith.mulf %43, %37 : vector<1x16xf32>
    %45 = arith.subf %8, %44 : vector<1x16xf32>
    %46 = arith.addf %45, %42 : vector<1x16xf32>
    %cst_20 = arith.constant 0.000000e+00 : f32
    %47 = vector.broadcast %cst_20 : f32 to vector<1x16xf32>
    %48 = arith.maximumf %46, %47 : vector<1x16xf32>
    %c16_i32 = arith.constant 16 : i32
    %49 = arith.muli %arg1, %c16_i32 : i32
    %50 = tpu.iota {dimensions = array<i32: 1>} : vector<1x16xi32>
    %51 = vector.broadcast %49 : i32 to vector<1x16xi32>
    %52 = arith.addi %50, %51 : vector<1x16xi32>
    %c16_i32_21 = arith.constant 16 : i32
    %53 = vector.broadcast %c16_i32_21 : i32 to vector<1x16xi32>
    %54 = arith.cmpi slt, %52, %53 : vector<1x16xi32>
    %55 = arith.extui %54 : vector<1x16xi1> to vector<1x16xi32>
    %56 = arith.sitofp %55 : vector<1x16xi32> to vector<1x16xf32>
    %57 = arith.mulf %34, %56 : vector<1x16xf32>
    %58 = vector.shape_cast %57 : vector<1x16xf32> to vector<1x1x16xf32>
    %cst_22 = arith.constant dense<0.000000e+00> : vector<1xf32>
    %59 = vector.multi_reduction <add>, %58, %cst_22 [1, 2] : vector<1x1x16xf32> to vector<1xf32>
    %60 = vector.shape_cast %59 : vector<1xf32> to vector<1x1x1xf32>
    %61 = vector.extract %60[0, 0, 0] : f32 from vector<1x1x1xf32>
    %62 = vector.broadcast %61 : f32 to vector<1x1xf32>
    %63 = arith.mulf %48, %56 : vector<1x16xf32>
    %64 = vector.shape_cast %63 : vector<1x16xf32> to vector<1x1x16xf32>
    %cst_23 = arith.constant dense<0.000000e+00> : vector<1xf32>
    %65 = vector.multi_reduction <add>, %64, %cst_23 [1, 2] : vector<1x1x16xf32> to vector<1xf32>
    %66 = vector.shape_cast %65 : vector<1xf32> to vector<1x1x1xf32>
    %67 = vector.extract %66[0, 0, 0] : f32 from vector<1x1x1xf32>
    %68 = vector.broadcast %67 : f32 to vector<1x1xf32>
    %69 = vector.shape_cast %62 : vector<1x1xf32> to vector<1x1x1x1xf32>
    %70 = vector.shape_cast %69 : vector<1x1x1x1xf32> to vector<1x1x1x1xf32>
    %71 = vector.broadcast %70 : vector<1x1x1x1xf32> to vector<1x1x8x128xf32>
    %c0_24 = arith.constant 0 : index
    %c0_25 = arith.constant 0 : index
    %c0_26 = arith.constant 0 : index
    %c0_27 = arith.constant 0 : index
    %72 = vector.load %arg7[%c0_24, %c0_25, %c0_26, %c0_27] : memref<1x1x8x128xf32, #tpu.memory_space<vmem>>, vector<1x1x8x128xf32>
    tpu.vector_store %arg7[%c0_24, %c0_25, %c0_26, %c0_27], %71 {strides = array<i32>} : memref<1x1x8x128xf32, #tpu.memory_space<vmem>>, vector<1x1x8x128xf32>,
    %73 = vector.shape_cast %68 : vector<1x1xf32> to vector<1x1x1x1xf32>
    %74 = vector.shape_cast %73 : vector<1x1x1x1xf32> to vector<1x1x1x1xf32>
    %75 = vector.broadcast %74 : vector<1x1x1x1xf32> to vector<1x1x8x128xf32>
    %c0_28 = arith.constant 0 : index
    %c0_29 = arith.constant 0 : index
    %c0_30 = arith.constant 0 : index
    %c0_31 = arith.constant 0 : index
    %76 = vector.load %arg8[%c0_28, %c0_29, %c0_30, %c0_31] : memref<1x1x8x128xf32, #tpu.memory_space<vmem>>, vector<1x1x8x128xf32>
    tpu.vector_store %arg8[%c0_28, %c0_29, %c0_30, %c0_31], %75 {strides = array<i32>} : memref<1x1x8x128xf32, #tpu.memory_space<vmem>>, vector<1x1x8x128xf32>,
    return
  }
  func.func @transform_0(%arg0: i32, %arg1: i32) -> (i32, i32, i32) {
    %c0_i32 = arith.constant 0 : i32
    %c0_i32_0 = arith.constant 0 : i32
    return %arg0, %c0_i32, %arg1 : i32, i32, i32
  }
  func.func @transform_1(%arg0: i32, %arg1: i32) -> (i32, i32, i32) {
    %c0_i32 = arith.constant 0 : i32
    %c0_i32_0 = arith.constant 0 : i32
    return %arg0, %c0_i32, %arg1 : i32, i32, i32
  }
  func.func @transform_2(%arg0: i32, %arg1: i32) -> (i32, i32) {
    %c0_i32 = arith.constant 0 : i32
    %c0_i32_0 = arith.constant 0 : i32
    %c0_i32_1 = arith.constant 0 : i32
    return %c0_i32, %c0_i32_0 : i32, i32
  }
  func.func @transform_3(%arg0: i32, %arg1: i32) -> (i32, i32) {
    %c0_i32 = arith.constant 0 : i32
    %c0_i32_0 = arith.constant 0 : i32
    %c0_i32_1 = arith.constant 0 : i32
    return %c0_i32, %c0_i32_0 : i32, i32
  }
  func.func @transform_4(%arg0: i32, %arg1: i32) -> (i32, i32) {
    %c0_i32 = arith.constant 0 : i32
    %c0_i32_0 = arith.constant 0 : i32
    %c0_i32_1 = arith.constant 0 : i32
    return %c0_i32, %c0_i32_0 : i32, i32
  }
  func.func @transform_5(%arg0: i32, %arg1: i32) -> (i32, i32, i32, i32) {
    %c0_i32 = arith.constant 0 : i32
    %c0_i32_0 = arith.constant 0 : i32
    %c0_i32_1 = arith.constant 0 : i32
    return %arg0, %arg1, %c0_i32, %c0_i32_0 : i32, i32, i32, i32
  }
  func.func @transform_6(%arg0: i32, %arg1: i32) -> (i32, i32, i32, i32) {
    %c0_i32 = arith.constant 0 : i32
    %c0_i32_0 = arith.constant 0 : i32
    %c0_i32_1 = arith.constant 0 : i32
    return %arg0, %arg1, %c0_i32, %c0_i32_0 : i32, i32, i32, i32
  }
}

</mosaic_0001>

<llo_original>
// kernel: tpu_custom_call.1
$region0: #{tpu_custom_call.1}
  #allocation0 [shape = 'u32[]', space=smem, size = 0x4, offset = 0x4, fixed_abs, tag = 'smem constant byte address 0x4 - core index']
  #allocation1 [shape = 'u32[144,128]{1,0:T(1,128)}', space=vmem, size = 0x12000, scoped, tag = 'internal scratch']
  %s0 = inlined_call_operand.hbm [shape: f32[2,32,16], index: 0, kind: input, shape index: {}]
  %s1 = inlined_call_operand.hbm [shape: s32[2,1,16], index: 1, kind: input, shape index: {}]
  %s2 = inlined_call_operand.hbm [shape: f32[8,32], index: 2, kind: input, shape index: {}]
  %s3 = inlined_call_operand.hbm [shape: f32[8,1], index: 3, kind: input, shape index: {}]
  %s4 = inlined_call_operand.hbm [shape: f32[8,1], index: 4, kind: input, shape index: {}]
  %s5 = inlined_call_operand.hbm [shape: f32[2,1,8,128], index: 5, kind: output, shape index: {0}]
  %s6 = inlined_call_operand.hbm [shape: f32[2,1,8,128], index: 6, kind: output, shape index: {1}]
  %7 = xla_tuple %s5, %s6
  %s8 = sld [smem:[#allocation0]]
  $region81: #{tpu_custom_call.1} parent=0
    _
  %s10 = ssub.s32 1, %s8
  %s11 = scalar_select 0, %s10, %s8
  $region1: #{tpu_custom_call.1} parent=0
    #allocation2 [shape = 'u8[32768]{0}', space=vmem, size = 0x8000, scoped, tag = 'input window, operand 0']
    #allocation3 [shape = 's32[2]{0}', space=sflag, size = 0x8, scoped, tag = 'scoped memory for tpu_custom_call.1']
    #allocation4 [shape = 's32[2]{0}', space=sflag, size = 0x8, scoped, tag = 'scoped memory for tpu_custom_call.1']
    #allocation5 [shape = 'u8[1024]{0}', space=vmem, size = 0x400, scoped, tag = 'input window, operand 1']
    #allocation6 [shape = 's32[2]{0}', space=sflag, size = 0x8, scoped, tag = 'scoped memory for tpu_custom_call.1']
    #allocation7 [shape = 'u8[4096]{0}', space=vmem, size = 0x1000, scoped, tag = 'input window, operand 2, single buffered']
    #allocation8 [shape = 'u8[4096]{0}', space=vmem, size = 0x1000, scoped, tag = 'input window, operand 3, single buffered']
    #allocation9 [shape = 's32[1]{0}', space=sflag, size = 0x4, scoped, tag = 'scoped memory for tpu_custom_call.1']
    #allocation10 [shape = 'u8[4096]{0}', space=vmem, size = 0x1000, scoped, tag = 'input window, operand 4, single buffered']
    #allocation11 [shape = 'u8[8192]{0}', space=vmem, size = 0x2000, scoped, tag = 'output window, operand 0']
    #allocation12 [shape = 'u8[8192]{0}', space=vmem, size = 0x2000, scoped, tag = 'output window, operand 1']
    #allocation13 [shape = 's32[2]{0}', space=sflag, size = 0x8, scoped, tag = 'scoped memory for tpu_custom_call.1']
    %12 = vsyncpa [#allocation3], 0
    %s13 = scalar_lea.sflag [#allocation3], 1
    %14 = vsyncpa %s13, 0
    %15 = vsyncpa [#allocation6], 0
    %s16 = scalar_lea.sflag [#allocation6], 1
    %17 = vsyncpa %s16, 0
    %18 = vsyncpa [#allocation9], 0
    %19 = vsyncpa [#allocation4], 0
    %s20 = scalar_lea.sflag [#allocation4], 1
    %21 = vsyncpa %s20, 0
    %22 = vsyncpa [#allocation13], 0
    %s23 = scalar_lea.sflag [#allocation13], 1
    %24 = vsyncpa %s23, 0
    loop: start=0, step=1, limit=4
    $region2: #{tpu_custom_call.1} parent=1 // loop_pre_header
      _
    $region3: #{tpu_custom_call.1} parent=1 // loop_header
      %s26 = sphi 0, %s30
      %p27 = scmp.ge.s32.totalorder %s26, 4
      %s33 = sphi 0, %s45
      %s34 = sphi 0, %s41
      %s35 = sphi 0, %s33
      %s36 = sphi 0, %s34
      %s37 = sphi 0, %s35
      %s38 = sphi 0, %s36
      %s50 = sphi 0, %s52
      %s53 = sphi 0, %s50
      %s54 = sphi 0, %s53
      %s70 = sphi 0, %s54
      %s78 = sphi 0, %s80
      %s81 = sphi 0, %s78
      %s82 = sphi 0, %s81
      %s98 = sphi 0, %s82
      %s102 = sphi 0, %s102
      %s104 = sphi 0, %s102
      %s105 = sphi 0, %s104
      %s119 = sphi 0, %s105
      %s123 = sphi 0, %s123
      %s125 = sphi 0, %s123
      %s126 = sphi 0, %s125
      %s140 = sphi 0, %s126
      %s144 = sphi 0, %s144
      %s146 = sphi 0, %s144
      %s147 = sphi 0, %s146
      %s161 = sphi 0, %s147
      %s169 = sphi 0, %s171
      %s172 = sphi 0, %s169
      %s173 = sphi 0, %s172
      %s189 = sphi 0, %s173
      %s197 = sphi 0, %s199
      %s200 = sphi 0, %s197
      %s201 = sphi 0, %s200
      %s217 = sphi 0, %s201
    $region4: #{tpu_custom_call.1} parent=1 // loop_header_branch
      %29 = sbr.rel (%p27) target = $region8
    $region5: #{tpu_custom_call.1} parent=1 // loop_body
      %s31 = ssub.s32 %s26, 1
      %s32 = ssub.s32 %s26, 2
      %s39 = sadd.s32 1, %s34
      %p40 = scmp.ge.s32.totalorder %s39, 1
      %s41 = scalar_select %p40, 0, %s39
      %s42 = sadd.s32 1, %s33
      %s43 = scalar_select %p40, %s42, %s33
      %p44 = scmp.ge.s32.totalorder %s43, 2
      %s45 = scalar_select %p44, 0, %s43
      %s46 = ssub.s32 %s33, %s45
      %s47 = ssub.s32 %s34, %s41
      %s48 = sor.u32 %s46, %s47
      %p49 = scmp.eq.s32.totalorder %s48, 0
      %s51 = sadd.s32 %s50, 1
      %s52 = scalar_select %p49, %s50, %s51
      %p55 = pneg %p49
      %p56 = scmp.eq.s32.totalorder %s26, 1
      %p57 = por %p55, %p56
      %p58 = scmp.ne.s32.totalorder %s50, %s53
      %p59 = scmp.eq.s32.totalorder %s26, 0
      %p60 = por %p58, %p59
      %p61 = scmp.ne.s32.totalorder %s50, %s53
      %p62 = scmp.eq.s32.totalorder %s31, 1
      %p63 = por %p61, %p62
      %p64 = scmp.ne.s32.totalorder %s53, %s54
      %p65 = scmp.eq.s32.totalorder %s31, 0
      %p66 = por %p64, %p65
      %p67 = scmp.ne.s32.totalorder %s53, %s54
      %p68 = scmp.eq.s32.totalorder %s32, 1
      %p69 = por %p67, %p68
      %p71 = scmp.ne.s32.totalorder %s54, %s70
      %p72 = scmp.eq.s32.totalorder %s32, 0
      %p73 = por %p71, %p72
      %s74 = ssub.s32 %s33, %s45
      %s75 = ssub.s32 %s34, %s41
      %s76 = sor.u32 %s74, %s75
      %p77 = scmp.eq.s32.totalorder %s76, 0
      %s79 = sadd.s32 %s78, 1
      %s80 = scalar_select %p77, %s78, %s79
      %p83 = pneg %p77
      %p84 = scmp.eq.s32.totalorder %s26, 1
      %p85 = por %p83, %p84
      %p86 = scmp.ne.s32.totalorder %s78, %s81
      %p87 = scmp.eq.s32.totalorder %s26, 0
      %p88 = por %p86, %p87
      %p89 = scmp.ne.s32.totalorder %s78, %s81
      %p90 = scmp.eq.s32.totalorder %s31, 1
      %p91 = por %p89, %p90
      %p92 = scmp.ne.s32.totalorder %s81, %s82
      %p93 = scmp.eq.s32.totalorder %s31, 0
      %p94 = por %p92, %p93
      %p95 = scmp.ne.s32.totalorder %s81, %s82
      %p96 = scmp.eq.s32.totalorder %s32, 1
      %p97 = por %p95, %p96
      %p99 = scmp.ne.s32.totalorder %s82, %s98
      %p100 = scmp.eq.s32.totalorder %s32, 0
      %p101 = por %p99, %p100
      %s103 = sadd.s32 %s102, 1
      %p106 = scmp.eq.s32.totalorder %s26, 1
      %p107 = scmp.ne.s32.totalorder %s102, %s104
      %p108 = scmp.eq.s32.totalorder %s26, 0
      %p109 = por %p107, %p108
      %p110 = scmp.ne.s32.totalorder %s102, %s104
      %p111 = scmp.eq.s32.totalorder %s31, 1
      %p112 = por %p110, %p111
      %p113 = scmp.ne.s32.totalorder %s104, %s105
      %p114 = scmp.eq.s32.totalorder %s31, 0
      %p115 = por %p113, %p114
      %p116 = scmp.ne.s32.totalorder %s104, %s105
      %p117 = scmp.eq.s32.totalorder %s32, 1
      %p118 = por %p116, %p117
      %p120 = scmp.ne.s32.totalorder %s105, %s119
      %p121 = scmp.eq.s32.totalorder %s32, 0
      %p122 = por %p120, %p121
      %s124 = sadd.s32 %s123, 1
      %p127 = scmp.eq.s32.totalorder %s26, 1
      %p128 = scmp.ne.s32.totalorder %s123, %s125
      %p129 = scmp.eq.s32.totalorder %s26, 0
      %p130 = por %p128, %p129
      %p131 = scmp.ne.s32.totalorder %s123, %s125
      %p132 = scmp.eq.s32.totalorder %s31, 1
      %p133 = por %p131, %p132
      %p134 = scmp.ne.s32.totalorder %s125, %s126
      %p135 = scmp.eq.s32.totalorder %s31, 0
      %p136 = por %p134, %p135
      %p137 = scmp.ne.s32.totalorder %s125, %s126
      %p138 = scmp.eq.s32.totalorder %s32, 1
      %p139 = por %p137, %p138
      %p141 = scmp.ne.s32.totalorder %s126, %s140
      %p142 = scmp.eq.s32.totalorder %s32, 0
      %p143 = por %p141, %p142
      %s145 = sadd.s32 %s144, 1
      %p148 = scmp.eq.s32.totalorder %s26, 1
      %p149 = scmp.ne.s32.totalorder %s144, %s146
      %p150 = scmp.eq.s32.totalorder %s26, 0
      %p151 = por %p149, %p150
      %p152 = scmp.ne.s32.totalorder %s144, %s146
      %p153 = scmp.eq.s32.totalorder %s31, 1
      %p154 = por %p152, %p153
      %p155 = scmp.ne.s32.totalorder %s146, %s147
      %p156 = scmp.eq.s32.totalorder %s31, 0
      %p157 = por %p155, %p156
      %p158 = scmp.ne.s32.totalorder %s146, %s147
      %p159 = scmp.eq.s32.totalorder %s32, 1
      %p160 = por %p158, %p159
      %p162 = scmp.ne.s32.totalorder %s147, %s161
      %p163 = scmp.eq.s32.totalorder %s32, 0
      %p164 = por %p162, %p163
      %s165 = ssub.s32 %s33, %s45
      %s166 = ssub.s32 %s34, %s41
      %s167 = sor.u32 %s165, %s166
      %p168 = scmp.eq.s32.totalorder %s167, 0
      %s170 = sadd.s32 %s169, 1
      %s171 = scalar_select %p168, %s169, %s170
      %p174 = pneg %p168
      %p175 = scmp.eq.s32.totalorder %s26, 1
      %p176 = por %p174, %p175
      %p177 = scmp.ne.s32.totalorder %s169, %s172
      %p178 = scmp.eq.s32.totalorder %s26, 0
      %p179 = por %p177, %p178
      %p180 = scmp.ne.s32.totalorder %s169, %s172
      %p181 = scmp.eq.s32.totalorder %s31, 1
      %p182 = por %p180, %p181
      %p183 = scmp.ne.s32.totalorder %s172, %s173
      %p184 = scmp.eq.s32.totalorder %s31, 0
      %p185 = por %p183, %p184
      %p186 = scmp.ne.s32.totalorder %s172, %s173
      %p187 = scmp.eq.s32.totalorder %s32, 1
      %p188 = por %p186, %p187
      %p190 = scmp.ne.s32.totalorder %s173, %s189
      %p191 = scmp.eq.s32.totalorder %s32, 0
      %p192 = por %p190, %p191
      %s193 = ssub.s32 %s33, %s45
      %s194 = ssub.s32 %s34, %s41
      %s195 = sor.u32 %s193, %s194
      %p196 = scmp.eq.s32.totalorder %s195, 0
      %s198 = sadd.s32 %s197, 1
      %s199 = scalar_select %p196, %s197, %s198
      %p202 = pneg %p196
      %p203 = scmp.eq.s32.totalorder %s26, 1
      %p204 = por %p202, %p203
      %p205 = scmp.ne.s32.totalorder %s197, %s200
      %p206 = scmp.eq.s32.totalorder %s26, 0
      %p207 = por %p205, %p206
      %p208 = scmp.ne.s32.totalorder %s197, %s200
      %p209 = scmp.eq.s32.totalorder %s31, 1
      %p210 = por %p208, %p209
      %p211 = scmp.ne.s32.totalorder %s200, %s201
      %p212 = scmp.eq.s32.totalorder %s31, 0
      %p213 = por %p211, %p212
      %p214 = scmp.ne.s32.totalorder %s200, %s201
      %p215 = scmp.eq.s32.totalorder %s32, 1
      %p216 = por %p214, %p215
      %p218 = scmp.ne.s32.totalorder %s201, %s217
      %p219 = scmp.eq.s32.totalorder %s32, 0
      %p220 = por %p218, %p219
      %p221 = scmp.le.s32.totalorder 1, %s26
      %p222 = scmp.lt.s32.totalorder %s26, 3
      %p223 = pnand %p221, %p222
      %p224 = pneg %p223
      // Predicated region
      $region9: #{tpu_custom_call.1} parent=5 // pred_check
        _
      $region10: #{tpu_custom_call.1} parent=5 // pred_check_branch
        %226 = sbr.rel (%p223) target = $region12
      $region11: #{tpu_custom_call.1} parent=5 // pred_region
        %s227 = ssub.s32 %s26, 1
        // Predicated region
        $region13: #{tpu_custom_call.1} parent=11 // pred_check
          %p228 = pneg %p115
        $region14: #{tpu_custom_call.1} parent=11 // pred_check_branch
          %230 = sbr.rel (%p228) target = $region16
        $region15: #{tpu_custom_call.1} parent=11 // pred_region
          %s232 = ssub.s32 128, 128
          %233 = vsyncadd [#allocation6], %s232
          %s235 = sshll.u32 [#allocation7], 4
          %s236 = int_to_ptr.vmem [resolvable:$true] %s235
          %238 = dma.hbm_to_vmem [thread:$0]  %s2, 128, %s236, [#allocation6]
        $region16: #{tpu_custom_call.1} parent=11 // pred_fallthru
          _
        // Predicated region
        $region17: #{tpu_custom_call.1} parent=11 // pred_check
          %p239 = pneg %p136
        $region18: #{tpu_custom_call.1} parent=11 // pred_check_branch
          %241 = sbr.rel (%p239) target = $region20
        $region19: #{tpu_custom_call.1} parent=11 // pred_region
          %s243 = ssub.s32 128, 128
          %244 = vsyncadd [#allocation9], %s243
          %s246 = sshll.u32 [#allocation8], 4
          %s247 = int_to_ptr.vmem [resolvable:$true] %s246
          %249 = dma.hbm_to_vmem [thread:$0]  %s3, 128, %s247, [#allocation9]
        $region20: #{tpu_custom_call.1} parent=11 // pred_fallthru
          _
        // Predicated region
        $region21: #{tpu_custom_call.1} parent=11 // pred_check
          %p250 = pneg %p157
        $region22: #{tpu_custom_call.1} parent=11 // pred_check_branch
          %252 = sbr.rel (%p250) target = $region24
        $region23: #{tpu_custom_call.1} parent=11 // pred_region
          %s254 = ssub.s32 128, 128
          %255 = vsyncadd [#allocation9], %s254
          %s257 = sshll.u32 [#allocation10], 4
          %s258 = int_to_ptr.vmem [resolvable:$true] %s257
          %260 = dma.hbm_to_vmem [thread:$0]  %s4, 128, %s258, [#allocation9]
        $region24: #{tpu_custom_call.1} parent=11 // pred_fallthru
          _
      $region12: #{tpu_custom_call.1} parent=5 // pred_fallthru
        _
      %p261 = scmp.lt.s32.totalorder %s26, 2
      // Predicated region
      $region25: #{tpu_custom_call.1} parent=5 // pred_check
        %p262 = pneg %p261
      $region26: #{tpu_custom_call.1} parent=5 // pred_check_branch
        %264 = sbr.rel (%p262) target = $region28
      $region27: #{tpu_custom_call.1} parent=5 // pred_region
        // Predicated region
        $region29: #{tpu_custom_call.1} parent=27 // pred_check
          %p265 = pneg %p60
        $region30: #{tpu_custom_call.1} parent=27 // pred_check_branch
          %267 = sbr.rel (%p265) target = $region32
        $region31: #{tpu_custom_call.1} parent=27 // pred_region
          %s268 = sand.u32 %s50, 1
          %s269 = scalar_lea.sflag [#allocation3], %s268
          %s270 = sand.u32 %s50, 1
          %s271 = smul.addr %s270, 32
          %s272 = scalar_lea.vmem [#allocation2], %s271
          %s274 = ssub.s32 512, 512
          %275 = vsyncadd %s269, %s274
          %s276 = smul.addr %s33, 4
          %s277 = sadd.s32 %s34, %s276
          %s278 = smul.addr %s277, 128
          %s279 = scalar_lea.hbm %s0, %s278
          %s280 = sshll.u32 %s272, 4
          %s281 = int_to_ptr.vmem [resolvable:$true] %s280
          %286 = dma.hbm_to_vmem [thread:$0]  %s279, 512, %s281, %s269, 128, 128, 8
        $region32: #{tpu_custom_call.1} parent=27 // pred_fallthru
          _
        // Predicated region
        $region33: #{tpu_custom_call.1} parent=27 // pred_check
          %p287 = pneg %p88
        $region34: #{tpu_custom_call.1} parent=27 // pred_check_branch
          %289 = sbr.rel (%p287) target = $region36
        $region35: #{tpu_custom_call.1} parent=27 // pred_region
          %s290 = sand.u32 %s26, 1
          %s291 = scalar_lea.sflag [#allocation6], %s290
          %s292 = sand.u32 %s78, 1
          %s293 = scalar_lea.vmem [#allocation5], %s292
          %s295 = ssub.s32 16, 16
          %296 = vsyncadd %s291, %s295
          %s297 = sadd.s32 %s34, %s33
          %s298 = smul.addr %s297, 16
          %s299 = scalar_lea.hbm %s1, %s298
          %s301 = sshll.u32 %s293, 4
          %s302 = int_to_ptr.vmem [resolvable:$true] %s301
          %304 = dma.hbm_to_vmem [thread:$0]  %s299, 16, %s302, %s291
        $region36: #{tpu_custom_call.1} parent=27 // pred_fallthru
          _
      $region28: #{tpu_custom_call.1} parent=5 // pred_fallthru
        _
      %p305 = scmp.le.s32.totalorder 1, %s26
      %p306 = scmp.lt.s32.totalorder %s26, 3
      %p307 = pnand %p305, %p306
      %p308 = pneg %p307
      // Predicated region
      $region37: #{tpu_custom_call.1} parent=5 // pred_check
        _
      $region38: #{tpu_custom_call.1} parent=5 // pred_check_branch
        %310 = sbr.rel (%p307) target = $region40
      $region39: #{tpu_custom_call.1} parent=5 // pred_region
        %s311 = ssub.s32 %s26, 1
        %s312 = sand.u32 %s53, 1
        %s313 = scalar_lea.sflag [#allocation3], %s312
        %s314 = sand.u32 %s53, 1
        %s315 = smul.addr %s314, 32
        %s316 = scalar_lea.vmem [#allocation2], %s315
        // Predicated region
        $region41: #{tpu_custom_call.1} parent=39 // pred_check
          %p317 = pneg %p66
        $region42: #{tpu_custom_call.1} parent=39 // pred_check_branch
          %319 = sbr.rel (%p317) target = $region44
        $region43: #{tpu_custom_call.1} parent=39 // pred_region
          %320 = dma.done %s313, 512
        $region44: #{tpu_custom_call.1} parent=39 // pred_fallthru
          _
        %s321 = sand.u32 %s31, 1
        %s322 = scalar_lea.sflag [#allocation6], %s321
        %s323 = sand.u32 %s81, 1
        %s324 = scalar_lea.vmem [#allocation5], %s323
        // Predicated region
        $region45: #{tpu_custom_call.1} parent=39 // pred_check
          %p325 = pneg %p94
        $region46: #{tpu_custom_call.1} parent=39 // pred_check_branch
          %327 = sbr.rel (%p325) target = $region48
        $region47: #{tpu_custom_call.1} parent=39 // pred_region
          %328 = dma.done %s322, 16
        $region48: #{tpu_custom_call.1} parent=39 // pred_fallthru
          _
        // Predicated region
        $region49: #{tpu_custom_call.1} parent=39 // pred_check
          %p329 = pneg %p115
        $region50: #{tpu_custom_call.1} parent=39 // pred_check_branch
          %331 = sbr.rel (%p329) target = $region52
        $region51: #{tpu_custom_call.1} parent=39 // pred_region
          %332 = dma.done [#allocation6], 128
        $region52: #{tpu_custom_call.1} parent=39 // pred_fallthru
          _
        // Predicated region
        $region53: #{tpu_custom_call.1} parent=39 // pred_check
          %p333 = pneg %p136
        $region54: #{tpu_custom_call.1} parent=39 // pred_check_branch
          %335 = sbr.rel (%p333) target = $region56
        $region55: #{tpu_custom_call.1} parent=39 // pred_region
          %336 = dma.done [#allocation9], 128
        $region56: #{tpu_custom_call.1} parent=39 // pred_fallthru
          _
        // Predicated region
        $region57: #{tpu_custom_call.1} parent=39 // pred_check
          %p337 = pneg %p157
        $region58: #{tpu_custom_call.1} parent=39 // pred_check_branch
          %339 = sbr.rel (%p337) target = $region60
        $region59: #{tpu_custom_call.1} parent=39 // pred_region
          %340 = dma.done [#allocation9], 128
        $region60: #{tpu_custom_call.1} parent=39 // pred_fallthru
          _
        %s341 = sand.u32 %s53, 1
        %s342 = scalar_lea.sflag [#allocation3], %s341
        %s343 = sand.u32 %s53, 1
        %s344 = smul.addr %s343, 32
        %s345 = scalar_lea.vmem [#allocation2], %s344
        %p346 = pneg %p66
        %p347 = pneg %p63
        %s348 = sand.u32 %s31, 1
        %s349 = scalar_lea.sflag [#allocation6], %s348
        %s350 = sand.u32 %s81, 1
        %s351 = scalar_lea.vmem [#allocation5], %s350
        %p352 = pneg %p94
        %p353 = pneg %p91
        %p354 = pneg %p115
        %p355 = pneg %p112
        %p356 = pneg %p136
        %p357 = pneg %p133
        %p358 = pneg %p157
        %p359 = pneg %p154
        %p360 = pneg %p185
        %p361 = pneg %p182
        %s362 = sand.u32 %s172, 1
        %s363 = scalar_lea.sflag [#allocation4], %s362
        %s364 = sand.u32 %s172, 1
        %s365 = smul.addr %s364, 8
        %s366 = scalar_lea.vmem [#allocation11], %s365
        %p367 = pneg %p213
        %p368 = pneg %p210
        %s369 = sand.u32 %s200, 1
        %s370 = scalar_lea.sflag [#allocation13], %s369
        %s371 = sand.u32 %s200, 1
        %s372 = smul.addr %s371, 8
        %s373 = scalar_lea.vmem [#allocation12], %s372
        %v374 = vld [vmem:[%s316] sm:$0xff]
        %v375 = vld [vmem:[%s316 + $0x8] sm:$0xff]
        %v376 = vld [vmem:[%s316 + $0x10] sm:$0xff]
        %v377 = vld [vmem:[%s316 + $0x18] sm:$0xff]
        %v378 = vld [vmem:[%s324] sm:$0x1]
        %v379 = vld [vmem:[#allocation7] sm:$0xff]
        %vm380 = vcmask 261120
        %v382 = vsel %vm380, %v379, 0
        %384 = vmatprep.subr.mxu0 0.0
        %385 = vmatpush1.msra.mxu0 %v374
        %386 = vmatprep.subr.mxu0 0.0
        %387 = vmatpush1.msra.mxu0 %v375
        %388 = vmatprep.subr.mxu0 0.0
        %389 = vmatpush1.msra.mxu0 %v376
        %390 = vmatprep.subr.mxu0 0.0
        %391 = vmatpush1.msra.mxu0 %v377
        %392 = vmatprep.subr.mxu0 0.0
        %393 = vmatpush1.msra.mxu0 0.0
        %394 = vmatprep.subr.mxu0 0.0
        %395 = vmatpush1.msra.mxu0 0.0
        %396 = vmatprep.subr.mxu0 0.0
        %397 = vmatpush1.msra.mxu0 0.0
        %398 = vmatprep.subr.mxu0 0.0
        %399 = vmatpush1.msra.mxu0 0.0
        %400 = vmatprep.subr.mxu0 0.0
        %401 = vmatpush1.msra.mxu0 0.0
        %402 = vmatprep.subr.mxu0 0.0
        %403 = vmatpush1.msra.mxu0 0.0
        %404 = vmatprep.subr.mxu0 0.0
        %405 = vmatpush1.msra.mxu0 0.0
        %406 = vmatprep.subr.mxu0 0.0
        %407 = vmatpush1.msra.mxu0 0.0
        %408 = vmatprep.subr.mxu0 0.0
        %409 = vmatpush1.msra.mxu0 0.0
        %410 = vmatprep.subr.mxu0 0.0
        %411 = vmatpush1.msra.mxu0 0.0
        %412 = vmatprep.subr.mxu0 0.0
        %413 = vmatpush1.msra.mxu0 0.0
        %414 = vmatprep.subr.mxu0 0.0
        %415 = vmatpush1.msra.mxu0 0.0
        %416 = vmatprep.subr.mxu0 0.0
        %417 = vmatpush1.msra.mxu0 0.0
        %418 = vmatprep.subr.mxu0 0.0
        %419 = vmatpush1.msra.mxu0 0.0
        %420 = vmatprep.subr.mxu0 0.0
        %421 = vmatpush1.msra.mxu0 0.0
        %422 = vmatprep.subr.mxu0 0.0
        %423 = vmatpush1.msra.mxu0 0.0
        %424 = vmatprep.subr.mxu0 0.0
        %425 = vmatpush1.msra.mxu0 0.0
        %426 = vmatprep.subr.mxu0 0.0
        %427 = vmatpush1.msra.mxu0 0.0
        %428 = vmatprep.subr.mxu0 0.0
        %429 = vmatpush1.msra.mxu0 0.0
        %430 = vmatprep.subr.mxu0 0.0
        %431 = vmatpush1.msra.mxu0 0.0
        %432 = vmatprep.subr.mxu0 0.0
        %433 = vmatpush1.msra.mxu0 0.0
        %434 = vmatprep.subr.mxu0 0.0
        %435 = vmatpush1.msra.mxu0 0.0
        %436 = vmatprep.subr.mxu0 0.0
        %437 = vmatpush1.msra.mxu0 0.0
        %438 = vmatprep.subr.mxu0 0.0
        %439 = vmatpush1.msra.mxu0 0.0
        %440 = vmatprep.subr.mxu0 0.0
        %441 = vmatpush1.msra.mxu0 0.0
        %442 = vmatprep.subr.mxu0 0.0
        %443 = vmatpush1.msra.mxu0 0.0
        %444 = vmatprep.subr.mxu0 0.0
        %445 = vmatpush1.msra.mxu0 0.0
        %446 = vmatprep.subr.mxu0 0.0
        %447 = vmatpush1.msra.mxu0 0.0
        %448 = vmatprep.mubr.f32.mxu0 0.0
        %449 = vmatmul.mubr.f32.gmra.mrb[0].mxu0 %v382
        %v450 = vpop.f32.mrb[0].mxu0
        %v451 = vadd.f32 0.0, %v450
        %v452 = vpop.f32.mrb[0].mxu0
        %453 = vdwg.mxu0
        %v454 = vmul.f32 %v374, %v374
        %v455 = vmul.f32 %v375, %v375
        %v456 = vmul.f32 %v376, %v376
        %v457 = vmul.f32 %v377, %v377
        %vm458 = vcmask 130048
        %v459 = vsel %vm458, %v454, 0.0
        %v460 = vsel %vm458, %v455, 0.0
        %v461 = vadd.f32 %v459, %v460
        %v462 = vsel %vm458, %v456, 0.0
        %v463 = vadd.f32 %v461, %v462
        %v464 = vsel %vm458, %v457, 0.0
        %v465 = vadd.f32 %v463, %v464
        %v466 = vrot.slane %v465, 4
        %v467 = vadd.f32 %v465, %v466
        %v468 = vrot.slane %v467, 2
        %v469 = vadd.f32 %v467, %v468
        %v470 = vrot.slane %v469, 1
        %v471 = vadd.f32 %v469, %v470
        %v472 = vrsqrt.pop %v471
        %v473 = vmul.f32 %v471, %v472
        %vm474 = vcmp.eq.f32.partialorder %v471, inf
        %v475 = vsel %vm474, %v471, %v473
        %vm476 = vcmp.eq.f32.partialorder %v471, 0.0
        %v477 = vand.u32 %v471, 2147483648
        %v478 = vsel %vm476, %v477, %v475
        %v479 = vmax.f32 %v478, 1e-08
        %v480 = vrcp.pop %v479
        %v481 = vmul.f32 %v451, %v480
        %v482 = vld [vmem:[#allocation8] sm:$0xff]
        %484 = vset.pattern.permute.xlu0 0
        %485 = vperm.xlu0 %484, %v482
        %v486 = vpop.permute.xlu0 %485
        %v488 = vmul.f32 %v481, %v486
        %v489 = vsub.f32 1.0, %v488
        %v490 = vlaneseq
        %v491 = vshrl.u32 %v490, 7
        %v492 = vlaneseq
        %v493 = vshrl.u32 %v492, 7
        %v494 = vsub.s32 0, %v493
        %v495 = vrot.slane %v378, %v494
        %vm496 = vcmp.eq.s32.totalorder %v491, %v495
        %v497 = vsel %vm496, 1, 0
        %v498 = vcvt.s32.f32 %v497
        %v499 = vmul.f32 %v498, %v489
        %v500 = vsel %vm458, %v499, 0.0
        %v501 = vrot.slane %v500, 4
        %v502 = vadd.f32 %v500, %v501
        %v503 = vrot.slane %v502, 2
        %v504 = vadd.f32 %v502, %v503
        %v505 = vrot.slane %v504, 1
        %v506 = vadd.f32 %v504, %v505
        %v507 = vsel %vm458, %v489, 0.0
        %v508 = vrot.slane %v507, 4
        %v509 = vadd.f32 %v507, %v508
        %v510 = vrot.slane %v509, 2
        %v511 = vadd.f32 %v509, %v510
        %v512 = vrot.slane %v511, 1
        %v513 = vadd.f32 %v511, %v512
        %v514 = vsub.f32 %v513, %v506
        %v515 = vmax.f32 %v514, 1e-08
        %v516 = vrcp.pop %v515
        %v517 = vmul.f32 %v506, %v516
        %v518 = vmul.f32 %v498, %v451
        %v519 = vsel %vm458, %v518, 0.0
        %v520 = vrot.slane %v519, 4
        %v521 = vadd.f32 %v519, %v520
        %v522 = vrot.slane %v521, 2
        %v523 = vadd.f32 %v521, %v522
        %v524 = vrot.slane %v523, 1
        %v525 = vadd.f32 %v523, %v524
        %v526 = vld [vmem:[#allocation10] sm:$0xff]
        %528 = vset.pattern.permute.xlu0 0
        %529 = vperm.xlu0 %528, %v526
        %v530 = vpop.permute.xlu0 %529
        %v532 = vmul.f32 %v498, %v530
        %v533 = vsel %vm458, %v532, 0.0
        %v534 = vrot.slane %v533, 4
        %v535 = vadd.f32 %v533, %v534
        %v536 = vrot.slane %v535, 2
        %v537 = vadd.f32 %v535, %v536
        %v538 = vrot.slane %v537, 1
        %v539 = vadd.f32 %v537, %v538
        %v540 = vmul.f32 %v525, 2.0
        %v541 = vsub.f32 %v471, %v540
        %v542 = vadd.f32 %v541, %v539
        %v543 = vmax.f32 %v542, 0.0
        %s544 = smul.u32 %s36, 16
        %v545 = vlaneseq
        %v546 = vand.u32 %v545, 127
        %v547 = vstv %s544
        %v548 = vadd.s32 %v546, %v547
        %vm549 = vcmp.lt.s32.totalorder %v548, 16
        %v550 = vsel %vm549, 1, 0
        %v551 = vcvt.s32.f32 %v550
        %v552 = vmul.f32 %v517, %v551
        %vm553 = vcmask 122880
        %v554 = vsel %vm553, %v552, 0.0
        %555 = vadd.xlane.f32.xlu0 %v554
        %v556 = vpop.xlane.xlu0 %555
        %v557 = vrot.slane %v556, 4
        %v558 = vadd.f32 %v556, %v557
        %v559 = vrot.slane %v558, 2
        %v560 = vadd.f32 %v558, %v559
        %v561 = vrot.slane %v560, 1
        %v562 = vadd.f32 %v560, %v561
        %s563 = vtos %v562
        %v564 = vmul.f32 %v543, %v551
        %v565 = vsel %vm553, %v564, 0.0
        %566 = vadd.xlane.f32.xlu0 %v565
        %v567 = vpop.xlane.xlu0 %566
        %v568 = vrot.slane %v567, 4
        %v569 = vadd.f32 %v567, %v568
        %v570 = vrot.slane %v569, 2
        %v571 = vadd.f32 %v569, %v570
        %v572 = vrot.slane %v571, 1
        %v573 = vadd.f32 %v571, %v572
        %s574 = vtos %v573
        %v575 = vstv %s563
        %576 = vst [vmem:[%s366] sm:$0xff] %v575
        %v577 = vstv %s574
        %578 = vst [vmem:[%s373] sm:$0xff] %v577
        %s579 = sand.u32 %s172, 1
        %s580 = scalar_lea.sflag [#allocation4], %s579
        %s581 = sand.u32 %s172, 1
        %s582 = smul.addr %s581, 8
        %s583 = scalar_lea.vmem [#allocation11], %s582
        %s584 = sand.u32 %s200, 1
        %s585 = scalar_lea.sflag [#allocation13], %s584
        %s586 = sand.u32 %s200, 1
        %s587 = smul.addr %s586, 8
        %s588 = scalar_lea.vmem [#allocation12], %s587
        // Predicated region
        $region61: #{tpu_custom_call.1} parent=39 // pred_check
          %p589 = pneg %p182
        $region62: #{tpu_custom_call.1} parent=39 // pred_check_branch
          %591 = sbr.rel (%p589) target = $region64
        $region63: #{tpu_custom_call.1} parent=39 // pred_region
          %s593 = ssub.s32 128, 128
          %594 = vsyncadd %s580, %s593
          %s595 = sadd.s32 %s36, %s35
          %s596 = smul.addr %s595, 128
          %s597 = scalar_lea.hbm %s5, %s596
          %s599 = sshll.u32 %s583, 4
          %s600 = int_to_ptr.vmem [resolvable:$true] %s599
          %602 = dma.vmem_to_hbm [thread:$0]  %s600, 128, %s597, %s580
        $region64: #{tpu_custom_call.1} parent=39 // pred_fallthru
          _
        // Predicated region
        $region65: #{tpu_custom_call.1} parent=39 // pred_check
          %p603 = pneg %p210
        $region66: #{tpu_custom_call.1} parent=39 // pred_check_branch
          %605 = sbr.rel (%p603) target = $region68
        $region67: #{tpu_custom_call.1} parent=39 // pred_region
          %s607 = ssub.s32 128, 128
          %608 = vsyncadd %s585, %s607
          %s609 = sadd.s32 %s36, %s35
          %s610 = smul.addr %s609, 128
          %s611 = scalar_lea.hbm %s6, %s610
          %s613 = sshll.u32 %s588, 4
          %s614 = int_to_ptr.vmem [resolvable:$true] %s613
          %616 = dma.vmem_to_hbm [thread:$0]  %s614, 128, %s611, %s585
        $region68: #{tpu_custom_call.1} parent=39 // pred_fallthru
          _
      $region40: #{tpu_custom_call.1} parent=5 // pred_fallthru
        _
      %p617 = scmp.le.s32.totalorder 2, %s26
      // Predicated region
      $region69: #{tpu_custom_call.1} parent=5 // pred_check
        %p618 = pneg %p617
      $region70: #{tpu_custom_call.1} parent=5 // pred_check_branch
        %620 = sbr.rel (%p618) target = $region72
      $region71: #{tpu_custom_call.1} parent=5 // pred_region
        %s621 = ssub.s32 %s26, 2
        // Predicated region
        $region73: #{tpu_custom_call.1} parent=71 // pred_check
          %p622 = pneg %p188
        $region74: #{tpu_custom_call.1} parent=71 // pred_check_branch
          %624 = sbr.rel (%p622) target = $region76
        $region75: #{tpu_custom_call.1} parent=71 // pred_region
          %s625 = sand.u32 %s173, 1
          %s626 = scalar_lea.sflag [#allocation4], %s625
          %s627 = sand.u32 %s173, 1
          %s628 = smul.addr %s627, 8
          %s629 = scalar_lea.vmem [#allocation11], %s628
          %630 = dma.done %s626, 128
        $region76: #{tpu_custom_call.1} parent=71 // pred_fallthru
          _
        // Predicated region
        $region77: #{tpu_custom_call.1} parent=71 // pred_check
          %p631 = pneg %p216
        $region78: #{tpu_custom_call.1} parent=71 // pred_check_branch
          %633 = sbr.rel (%p631) target = $region80
        $region79: #{tpu_custom_call.1} parent=71 // pred_region
          %s634 = sand.u32 %s201, 1
          %s635 = scalar_lea.sflag [#allocation13], %s634
          %s636 = sand.u32 %s201, 1
          %s637 = smul.addr %s636, 8
          %s638 = scalar_lea.vmem [#allocation12], %s637
          %639 = dma.done %s635, 128
        $region80: #{tpu_custom_call.1} parent=71 // pred_fallthru
          _
      $region72: #{tpu_custom_call.1} parent=5 // pred_fallthru
        _
    $region6: #{tpu_custom_call.1} parent=1 // loop_footer
      %s30 = sadd.s32 1, %s26
    $region7: #{tpu_custom_call.1} parent=1 // loop_footer_branch
      %25 = sbr.rel target = $region3
    $region8: #{tpu_custom_call.1} parent=1 // loop_exit
      _
    %640 = vsyncpa [#allocation3], 1
    %s641 = scalar_lea.sflag [#allocation3], 1
    %642 = vsyncpa %s641, 1
    %643 = vsyncpa [#allocation6], 1
    %s644 = scalar_lea.sflag [#allocation6], 1
    %645 = vsyncpa %s644, 1
    %646 = vsyncpa [#allocation9], 1
    %647 = vsyncpa [#allocation4], 1
    %s648 = scalar_lea.sflag [#allocation4], 1
    %649 = vsyncpa %s648, 1
    %650 = vsyncpa [#allocation13], 1
    %s651 = scalar_lea.sflag [#allocation13], 1
    %652 = vsyncpa %s651, 1

</llo_original>
